<compile_context>
chip_gen: v7x
topology: tpu7x:2x2x1
jax: 0.10.0
libtpu: 0.0.40
codegen_flags: <defaults>
</compile_context>

<pallas_src>
import functools

import jax
import jax.numpy as jnp
from jax.experimental import pallas as pl
from jax.experimental.pallas import tpu as pltpu

_EPS = 1e-6  # matches torch.nn.functional.pairwise_distance default eps


def _chip_config():
    """Generation-aware block-byte budget, chunk split and VMEM limit."""
    kind = ""
    try:
        kind = jax.devices()[0].device_kind.lower()
    except Exception:
        pass
    single_tc = any(t in kind for t in ("lite", "v5e", "v6e"))
    if single_tc:
        # v5e / v6e: one TensorCore, 128 MiB physical VMEM -> bigger blocks, no chunk split.
        return {"block_bytes": 6 << 20, "max_chunks": 1, "vmem_limit": 64 << 20}
    # v7x (64 MiB VMEM/TC, 2 TCs sharing HBM) and other megacore chips / unknown:
    # conservative VMEM, split the batch across both TensorCores.
    return {"block_bytes": 4 << 20, "max_chunks": 2, "vmem_limit": 48 << 20}


def _contrastive_kernel(x1_ref, x2_ref, wpos_ref, wneg_ref, sel_ref,
                        out_ref, acc_ref, *, margin, k, tiles_per_chunk,
                        last_block, valid_rows_last, ragged, inv_batch):
    c = pl.program_id(0)          # "parallel" chunk axis (one per TensorCore on megacore)
    i = pl.program_id(1)          # "arbitrary" reduction axis over row tiles

    @pl.when(i == 0)
    def _init():
        acc_ref[...] = jnp.zeros_like(acc_ref)

    x1 = x1_ref[...].astype(jnp.float32)          # (TB, Dp)
    x2 = x2_ref[...].astype(jnp.float32)
    diff = x1 - x2 + _EPS                         # pairwise_distance adds eps to the diff
    d2 = diff * diff

    if k == 1:
        # Generic path: per-row squared distance via a lane reduction.
        sq = jnp.sum(d2, axis=-1, keepdims=True)                      # (TB, 1)
    else:
        # Lane-packed path: block-diagonal 0/1 selector recovers the k per-original-row sums
        # with one small MXU matmul (no cross-lane XLU reduce, no sparse-lane VPU work).
        sq = jnp.dot(d2, sel_ref[...],
                     precision=jax.lax.Precision.HIGHEST,
                     preferred_element_type=jnp.float32)              # (TB, k)

    d = jnp.sqrt(sq)                              # EUP sqrt; only feeds the hinge
    hinge = jnp.maximum(margin - d, 0.0)
    hinge_sq = hinge * hinge

    w_pos = wpos_ref[0]                           # (TB, k), zero past the true batch
    w_neg = wneg_ref[0]

    def _accum(sq_v, hinge_v):
        contrib = w_pos * sq_v + w_neg * hinge_v                  # (TB, k)
        part = jnp.sum(contrib, axis=1, keepdims=True)            # (TB, 1)
        acc_ref[...] += jnp.sum(part, axis=0, keepdims=True)      # (1, 1)

    if ragged:
        # Only the last real block (and any clamped phantom tile) can contain rows past the
        # array end; guard those with a select so NaN/Inf garbage cannot poison the 0-weights.
        tile_idx = c * tiles_per_chunk + i

        @pl.when(tile_idx < last_block)
        def _interior():
            _accum(sq, hinge_sq)

        @pl.when(tile_idx >= last_block)
        def _tail():
            row = jax.lax.broadcasted_iota(jnp.int32, (sq.shape[0], 1), 0)
            valid = row < valid_rows_last
            _accum(jnp.where(valid, sq, 0.0), jnp.where(valid, hinge_sq, 0.0))
    else:
        _accum(sq, hinge_sq)

    @pl.when(i == pl.num_programs(1) - 1)
    def _finalize():
        out_ref[0] = acc_ref[...] * inv_batch      # partial mean for this chunk


def contrastive_loss(output1, output2, label, *, margin=1.0, block_rows=None):
    """output1, output2: (B, D); label: (B,) or (B, 1). Returns scalar f32 loss."""
    B, D = output1.shape
    itemsize = jnp.dtype(output1.dtype).itemsize
    sublane = {4: 8, 2: 16, 1: 32}.get(itemsize, 8)
    cfg = _chip_config()

    # Lane packing: view (B, D) as (B/k, k*D) with k*D == 128 when possible (free reshape).
    if 0 < D < 128 and 128 % D == 0 and B % (128 // D) == 0:
        k = 128 // D
    else:
        k = 1
    Dp = k * D
    bp = B // k                                   # streamed ("packed") row count
    x1 = output1.reshape(bp, Dp)
    x2 = output2.reshape(bp, Dp)
    lbl = jnp.reshape(label, (B,)).astype(jnp.float32)

    b_arr = bp
    if b_arr < sublane:                           # tiny-batch corner: pad to one sublane group
        pad = sublane - b_arr
        x1 = jnp.pad(x1, ((0, pad), (0, 0)))
        x2 = jnp.pad(x2, ((0, pad), (0, 0)))
        b_arr = sublane

    # Block rows sized by bytes (f32-equivalent, so in-kernel upcast temporaries are budgeted).
    if block_rows is None:
        tb = cfg["block_bytes"] // max(1, Dp * 4)
    else:
        tb = int(block_rows)
    tb = max(sublane, (tb // sublane) * sublane)
    tb = min(tb, max(sublane, (b_arr // sublane) * sublane))    # keep block <= array
    # TODO(synk): for extremely large D (one row tile exceeds the block budget), add a second
    # "arbitrary" grid axis over the feature dim instead of shrinking tb to one sublane group.

    if cfg["max_chunks"] > 1 and b_arr >= 2 * sublane:
        # Cap tb so g >= 2 and the leading "parallel" axis gives each TensorCore real work.
        half = -(-b_arr // 2)
        half = -(-half // sublane) * sublane
        tb = min(tb, half)

    g = pl.cdiv(b_arr, tb)                        # row tiles actually covering the data
    nc = cfg["max_chunks"] if g >= cfg["max_chunks"] else 1
    tpc = pl.cdiv(g, nc)                          # tiles per chunk (may include a phantom tile)
    g_round = nc * tpc
    last_block = g - 1
    ragged = (b_arr % tb) != 0
    valid_rows_last = b_arr - last_block * tb

    # Positive / negative weight vectors, zero past the true batch, laid out per tile as
    # (g_round, tb, k) so the kernel never does label-layout work or per-step masking.
    pad_to = g_round * tb * k
    w_pos = jnp.pad(lbl, (0, pad_to - B)).reshape(g_round, tb, k)
    w_neg = jnp.pad(1.0 - lbl, (0, pad_to - B)).reshape(g_round, tb, k)

    # Block-diagonal 0/1 selector for the lane-packed path (ones column when k == 1, unused).
    sel = (jnp.arange(Dp)[:, None] // D == jnp.arange(k)[None, :]).astype(jnp.float32)

    def x_index_map(c, i):                        # clamp phantom tiles onto the last real block
        return (jnp.minimum(c * tpc + i, last_block), 0)

    def w_index_map(c, i):
        return (c * tpc + i, 0, 0)

    kernel = functools.partial(
        _contrastive_kernel, margin=float(margin), k=k, tiles_per_chunk=tpc,
        last_block=last_block, valid_rows_last=valid_rows_last, ragged=ragged,
        inv_batch=1.0 / B)

    partials = pl.pallas_call(
        kernel,
        out_shape=jax.ShapeDtypeStruct((nc, 1, 1), jnp.float32),
        grid_spec=pltpu.PrefetchScalarGridSpec(
            num_scalar_prefetch=0,
            grid=(nc, tpc),
            in_specs=[
                pl.BlockSpec((tb, Dp), x_index_map),
                pl.BlockSpec((tb, Dp), x_index_map),
                pl.BlockSpec((1, tb, k), w_index_map),
                pl.BlockSpec((1, tb, k), w_index_map),
                pl.BlockSpec((Dp, k), lambda c, i: (0, 0)),
            ],
            out_specs=pl.BlockSpec((1, 1, 1), lambda c, i: (c, 0, 0)),
            scratch_shapes=[pltpu.VMEM((1, 1), jnp.float32)],
        ),
        compiler_params=pltpu.CompilerParams(
            dimension_semantics=("parallel", "arbitrary"),
            vmem_limit_bytes=cfg["vmem_limit"],
        ),
    )(x1, x2, w_pos, w_neg, sel)
    return jnp.sum(partials)


def _reference(output1, output2, label, margin=1.0):
    # Plain-JAX reference mirroring the PyTorch module.
    d = jnp.sqrt(jnp.sum((output1 - output2 + _EPS) ** 2, axis=-1))
    return jnp.mean(label * d ** 2 + (1.0 - label) * jnp.maximum(margin - d, 0.0) ** 2)


if __name__ == "__main__":
    key = jax.random.PRNGKey(0)
    ks = jax.random.split(key, 9)

    def _check(o1, o2, lb, **kw):
        loss = jax.block_until_ready(contrastive_loss(o1, o2, lb, **kw))
        ref = _reference(o1, o2, lb, margin=kw.get("margin", 1.0))
        assert jnp.allclose(loss, ref, rtol=1e-5, atol=1e-5), (loss, ref)
        return loss

    # Primary small shape implied by the module: a batch of embedding pairs.
    B, D = 8, 32
    o1 = jax.random.normal(ks[0], (B, D), dtype=jnp.float32)
    o2 = jax.random.normal(ks[1], (B, D), dtype=jnp.float32)
    lb = jax.random.bernoulli(ks[2], 0.5, (B,)).astype(jnp.float32)
    _check(o1, o2, lb)

    # Multi-tile grid + lane packing + ragged tail (+ phantom tile on megacore chips).
    B2, D2 = 88, 32
    o1 = jax.random.normal(ks[3], (B2, D2), dtype=jnp.float32)
    o2 = jax.random.normal(ks[4], (B2, D2), dtype=jnp.float32)
    lb = jax.random.bernoulli(ks[5], 0.5, (B2,)).astype(jnp.float32)
    _check(o1, o2, lb, block_rows=8)

    # Unpacked path (feature dim does not divide 128), non-divisible batch, custom margin.
    B3, D3 = 40, 48
    o1 = jax.random.normal(ks[6], (B3, D3), dtype=jnp.float32)
    o2 = jax.random.normal(ks[7], (B3, D3), dtype=jnp.float32)
    lb = jax.random.bernoulli(ks[8], 0.5, (B3,)).astype(jnp.float32)
    _check(o1, o2, lb, block_rows=16, margin=0.5)

    print("KERNEL_OK")
</pallas_src>

<mosaic_0001>
module attributes {stable_mosaic.version = 11 : i64} {
  func.func @_contrastive_kernel(%arg0: i32, %arg1: i32, %arg2: memref<8x128xf32, #tpu.memory_space<vmem>>, %arg3: memref<8x128xf32, #tpu.memory_space<vmem>>, %arg4: memref<1x8x4xf32, #tpu.memory_space<vmem>>, %arg5: memref<1x8x4xf32, #tpu.memory_space<vmem>>, %arg6: memref<128x4xf32, #tpu.memory_space<vmem>>, %arg7: memref<1x1x1xf32, #tpu.memory_space<vmem>>, %arg8: memref<1x1xf32, #tpu.memory_space<vmem>>) attributes {dimension_semantics = [#tpu.dimension_semantics<parallel>, #tpu.dimension_semantics<arbitrary>], iteration_bounds = array<i64: 1, 1>, scalar_prefetch = 0 : i64, scratch_operands = 1 : i64, tpu.core_type = #tpu.core_type<tc>, window_params = [{transform_indices = @transform_0, window_bounds = array<i64: 8, 128>}, {transform_indices = @transform_1, window_bounds = array<i64: 8, 128>}, {transform_indices = @transform_2, window_bounds = array<i64: 1, 8, 4>}, {transform_indices = @transform_3, window_bounds = array<i64: 1, 8, 4>}, {pipeline_mode = #tpu.pipeline_mode<synchronous>, transform_indices = @transform_4, window_bounds = array<i64: 128, 4>}, {transform_indices = @transform_5, window_bounds = array<i64: 1, 1, 1>}]} {
    %c0_i32 = arith.constant 0 : i32
    %0 = arith.cmpi eq, %arg1, %c0_i32 : i32
    %1 = arith.extui %0 : i1 to i32
    %c0_i32_0 = arith.constant 0 : i32
    %2 = arith.cmpi ne, %1, %c0_i32_0 : i32
    scf.if %2 {
      %cst_23 = arith.constant 0.000000e+00 : f32
      %34 = vector.broadcast %cst_23 : f32 to vector<1x1xf32>
      %c0_24 = arith.constant 0 : index
      %c0_25 = arith.constant 0 : index
      %35 = vector.load %arg8[%c0_24, %c0_25] : memref<1x1xf32, #tpu.memory_space<vmem>>, vector<1x1xf32>
      tpu.vector_store %arg8[%c0_24, %c0_25], %34 {strides = array<i32>} : memref<1x1xf32, #tpu.memory_space<vmem>>, vector<1x1xf32>,
    } else {
    }
    %c0 = arith.constant 0 : index
    %c0_1 = arith.constant 0 : index
    %3 = vector.load %arg2[%c0, %c0_1] : memref<8x128xf32, #tpu.memory_space<vmem>>, vector<8x128xf32>
    %c0_2 = arith.constant 0 : index
    %c0_3 = arith.constant 0 : index
    %4 = vector.load %arg3[%c0_2, %c0_3] : memref<8x128xf32, #tpu.memory_space<vmem>>, vector<8x128xf32>
    %5 = arith.subf %3, %4 : vector<8x128xf32>
    %cst = arith.constant 9.99999997E-7 : f32
    %6 = vector.broadcast %cst : f32 to vector<8x128xf32>
    %7 = arith.addf %5, %6 : vector<8x128xf32>
    %8 = arith.mulf %7, %7 : vector<8x128xf32>
    %c0_4 = arith.constant 0 : index
    %c0_5 = arith.constant 0 : index
    %9 = vector.load %arg6[%c0_4, %c0_5] : memref<128x4xf32, #tpu.memory_space<vmem>>, vector<128x4xf32>
    %cst_6 = arith.constant dense<0.000000e+00> : vector<8x4xf32>
    %10 = tpu.matmul %8, %9, %cst_6 {dimension_numbers = #tpu.dot_dimension_numbers<[1], [0], [0], [1], [0, 0, 1, 1], [], []>, precision = #tpu.contract_precision<fp32>} : vector<8x128xf32>, vector<128x4xf32>, vector<8x4xf32> -> vector<8x4xf32>
    %11 = math.sqrt %10 : vector<8x4xf32>
    %cst_7 = arith.constant 1.000000e+00 : f32
    %12 = vector.broadcast %cst_7 : f32 to vector<8x4xf32>
    %13 = arith.subf %12, %11 : vector<8x4xf32>
    %cst_8 = arith.constant 0.000000e+00 : f32
    %14 = vector.broadcast %cst_8 : f32 to vector<8x4xf32>
    %15 = arith.maximumf %13, %14 : vector<8x4xf32>
    %16 = arith.mulf %15, %15 : vector<8x4xf32>
    %c0_9 = arith.constant 0 : index
    %c0_10 = arith.constant 0 : index
    %c0_11 = arith.constant 0 : index
    %17 = vector.load %arg4[%c0_9, %c0_10, %c0_11] : memref<1x8x4xf32, #tpu.memory_space<vmem>>, vector<1x8x4xf32>
    %18 = vector.shape_cast %17 : vector<1x8x4xf32> to vector<8x4xf32>
    %c0_12 = arith.constant 0 : index
    %c0_13 = arith.constant 0 : index
    %c0_14 = arith.constant 0 : index
    %19 = vector.load %arg5[%c0_12, %c0_13, %c0_14] : memref<1x8x4xf32, #tpu.memory_space<vmem>>, vector<1x8x4xf32>
    %20 = vector.shape_cast %19 : vector<1x8x4xf32> to vector<8x4xf32>
    %21 = arith.mulf %18, %10 : vector<8x4xf32>
    %22 = arith.mulf %20, %16 : vector<8x4xf32>
    %23 = arith.addf %21, %22 : vector<8x4xf32>
    %cst_15 = arith.constant dense<0.000000e+00> : vector<8xf32>
    %24 = vector.multi_reduction <add>, %23, %cst_15 [1] : vector<8x4xf32> to vector<8xf32>
    %25 = vector.shape_cast %24 : vector<8xf32> to vector<8x1xf32>
    %c0_16 = arith.constant 0 : index
    %c0_17 = arith.constant 0 : index
    %26 = vector.load %arg8[%c0_16, %c0_17] : memref<1x1xf32, #tpu.memory_space<vmem>>, vector<1x1xf32>
    %cst_18 = arith.constant dense<0.000000e+00> : vector<1xf32>
    %27 = vector.multi_reduction <add>, %25, %cst_18 [0] : vector<8x1xf32> to vector<1xf32>
    %28 = vector.shape_cast %27 : vector<1xf32> to vector<1x1xf32>
    %29 = arith.addf %26, %28 : vector<1x1xf32>
    %c0_19 = arith.constant 0 : index
    %c0_20 = arith.constant 0 : index
    %30 = vector.load %arg8[%c0_19, %c0_20] : memref<1x1xf32, #tpu.memory_space<vmem>>, vector<1x1xf32>
    tpu.vector_store %arg8[%c0_19, %c0_20], %29 {strides = array<i32>} : memref<1x1xf32, #tpu.memory_space<vmem>>, vector<1x1xf32>,
    %c0_i32_21 = arith.constant 0 : i32
    %31 = arith.cmpi eq, %arg1, %c0_i32_21 : i32
    %32 = arith.extui %31 : i1 to i32
    %c0_i32_22 = arith.constant 0 : i32
    %33 = arith.cmpi ne, %32, %c0_i32_22 : i32
    scf.if %33 {
      %c0_23 = arith.constant 0 : index
      %c0_24 = arith.constant 0 : index
      %34 = vector.load %arg8[%c0_23, %c0_24] : memref<1x1xf32, #tpu.memory_space<vmem>>, vector<1x1xf32>
      %cst_25 = arith.constant 1.250000e-01 : f32
      %35 = vector.broadcast %cst_25 : f32 to vector<1x1xf32>
      %36 = arith.mulf %34, %35 : vector<1x1xf32>
      %c0_26 = arith.constant 0 : index
      %c0_27 = arith.constant 0 : index
      %c0_28 = arith.constant 0 : index
      %37 = vector.load %arg7[%c0_26, %c0_27, %c0_28] : memref<1x1x1xf32, #tpu.memory_space<vmem>>, vector<1x1x1xf32>
      %38 = vector.shape_cast %37 : vector<1x1x1xf32> to vector<1x1xf32>
      %39 = vector.shape_cast %36 : vector<1x1xf32> to vector<1x1x1xf32>
      tpu.vector_store %arg7[%c0_26, %c0_27, %c0_28], %39 {strides = array<i32>} : memref<1x1x1xf32, #tpu.memory_space<vmem>>, vector<1x1x1xf32>,
    } else {
    }
    return
  }
  func.func @transform_0(%arg0: i32, %arg1: i32) -> (i32, i32) {
    %c1_i32 = arith.constant 1 : i32
    %0 = arith.muli %arg0, %c1_i32 : i32
    %1 = arith.addi %0, %arg1 : i32
    %c0_i32 = arith.constant 0 : i32
    %2 = arith.minsi %1, %c0_i32 : i32
    %c0_i32_0 = arith.constant 0 : i32
    %c0_i32_1 = arith.constant 0 : i32
    return %2, %c0_i32_0 : i32, i32
  }
  func.func @transform_1(%arg0: i32, %arg1: i32) -> (i32, i32) {
    %c1_i32 = arith.constant 1 : i32
    %0 = arith.muli %arg0, %c1_i32 : i32
    %1 = arith.addi %0, %arg1 : i32
    %c0_i32 = arith.constant 0 : i32
    %2 = arith.minsi %1, %c0_i32 : i32
    %c0_i32_0 = arith.constant 0 : i32
    %c0_i32_1 = arith.constant 0 : i32
    return %2, %c0_i32_0 : i32, i32
  }
  func.func @transform_2(%arg0: i32, %arg1: i32) -> (i32, i32, i32) {
    %c1_i32 = arith.constant 1 : i32
    %0 = arith.muli %arg0, %c1_i32 : i32
    %1 = arith.addi %0, %arg1 : i32
    %c0_i32 = arith.constant 0 : i32
    %c0_i32_0 = arith.constant 0 : i32
    %c0_i32_1 = arith.constant 0 : i32
    return %1, %c0_i32, %c0_i32_0 : i32, i32, i32
  }
  func.func @transform_3(%arg0: i32, %arg1: i32) -> (i32, i32, i32) {
    %c1_i32 = arith.constant 1 : i32
    %0 = arith.muli %arg0, %c1_i32 : i32
    %1 = arith.addi %0, %arg1 : i32
    %c0_i32 = arith.constant 0 : i32
    %c0_i32_0 = arith.constant 0 : i32
    %c0_i32_1 = arith.constant 0 : i32
    return %1, %c0_i32, %c0_i32_0 : i32, i32, i32
  }
  func.func @transform_4(%arg0: i32, %arg1: i32) -> (i32, i32) {
    %c0_i32 = arith.constant 0 : i32
    %c0_i32_0 = arith.constant 0 : i32
    %c0_i32_1 = arith.constant 0 : i32
    return %c0_i32, %c0_i32_0 : i32, i32
  }
  func.func @transform_5(%arg0: i32, %arg1: i32) -> (i32, i32, i32) {
    %c0_i32 = arith.constant 0 : i32
    %c0_i32_0 = arith.constant 0 : i32
    %c0_i32_1 = arith.constant 0 : i32
    return %arg0, %c0_i32, %c0_i32_0 : i32, i32, i32
  }
}

</mosaic_0001>

<llo_original>
// kernel: tpu_custom_call.1
$region0: #{tpu_custom_call.1}
  #allocation0 [shape = 'u32[]', space=smem, size = 0x4, offset = 0x4, fixed_abs, tag = 'smem constant byte address 0x4 - core index']
  #allocation1 [shape = 'u32[144,128]{1,0:T(1,128)}', space=vmem, size = 0x12000, scoped, tag = 'internal scratch']
  #allocation2 [shape = 'f32[1,1]{1,0:T(1,128)}', space=vmem, size = 0x200, scoped, tag = 'scratch operand']
  %s0 = inlined_call_operand.vmem [shape: f32[8,128], index: 0, kind: input, shape index: {}]
  %s1 = inlined_call_operand.vmem [shape: f32[8,128], index: 1, kind: input, shape index: {}]
  %s2 = inlined_call_operand.vmem [shape: f32[1,8,4], index: 2, kind: input, shape index: {}]
  %s3 = inlined_call_operand.vmem [shape: f32[1,8,4], index: 3, kind: input, shape index: {}]
  %s4 = inlined_call_operand.vmem [shape: f32[128,4], index: 4, kind: input, shape index: {}]
  %s5 = inlined_call_operand.hbm [shape: f32[1,1,1], index: 5, kind: output, shape index: {}]
  %s6 = sld [smem:[#allocation0]]
  $region38: #{tpu_custom_call.1} parent=0
    _
  %s8 = ssub.s32 1, %s6
  %s9 = scalar_select 0, %s8, %s6
  $region1: #{tpu_custom_call.1} parent=0
    #allocation3 [shape = 'u8[512]{0}', space=vmem, size = 0x400, scoped, tag = 'output window, operand 0, single buffered']
    #allocation4 [shape = 's32[1]{0}', space=sflag, size = 0x4, scoped, tag = 'scoped memory for tpu_custom_call.1']
    %10 = vsyncpa [#allocation4], 0
    // Predicated region
    $region2: #{tpu_custom_call.1} parent=1 // pred_check
      _
    $region3: #{tpu_custom_call.1} parent=1 // pred_check_branch
      %12 = sbr.rel (0) target = $region5
    $region4: #{tpu_custom_call.1} parent=1 // pred_region
      %s13 = sadd.s32 0, 0
      %p14 = scmp.lt.s32.totalorder %s13, 0
      %s15 = scalar_select %p14, %s13, 0
      %p16 = scmp.lt.s32.totalorder %s15, 0
      %s17 = scalar_select %p16, %s15, 0
      %s18 = smul.addr %s17, 8
      %s19 = scalar_lea.vmem %s0, %s18
      %s20 = sadd.s32 0, 0
      %p21 = scmp.lt.s32.totalorder %s20, 0
      %s22 = scalar_select %p21, %s20, 0
    $region5: #{tpu_custom_call.1} parent=1 // pred_fallthru
      _
    // Predicated region
    $region6: #{tpu_custom_call.1} parent=1 // pred_check
      _
    $region7: #{tpu_custom_call.1} parent=1 // pred_check_branch
      %24 = sbr.rel (0) target = $region9
    $region8: #{tpu_custom_call.1} parent=1 // pred_region
      %s25 = sadd.s32 0, 0
      %p26 = scmp.lt.s32.totalorder %s25, 0
      %s27 = scalar_select %p26, %s25, 0
      %p28 = scmp.lt.s32.totalorder %s27, 0
      %s29 = scalar_select %p28, %s27, 0
      %s30 = smul.addr %s29, 8
      %s31 = scalar_lea.vmem %s1, %s30
      %s32 = sadd.s32 0, 0
      %p33 = scmp.lt.s32.totalorder %s32, 0
      %s34 = scalar_select %p33, %s32, 0
    $region9: #{tpu_custom_call.1} parent=1 // pred_fallthru
      _
    // Predicated region
    $region10: #{tpu_custom_call.1} parent=1 // pred_check
      _
    $region11: #{tpu_custom_call.1} parent=1 // pred_check_branch
      %36 = sbr.rel (0) target = $region13
    $region12: #{tpu_custom_call.1} parent=1 // pred_region
      %s37 = sadd.s32 0, 0
      %p38 = scmp.lt.s32.totalorder %s37, 0
      %s39 = scalar_select %p38, %s37, 0
      %s40 = smul.addr %s39, 8
      %s41 = scalar_lea.vmem %s2, %s40
      %s42 = sadd.s32 0, 0
    $region13: #{tpu_custom_call.1} parent=1 // pred_fallthru
      _
    // Predicated region
    $region14: #{tpu_custom_call.1} parent=1 // pred_check
      _
    $region15: #{tpu_custom_call.1} parent=1 // pred_check_branch
      %44 = sbr.rel (0) target = $region17
    $region16: #{tpu_custom_call.1} parent=1 // pred_region
      %s45 = sadd.s32 0, 0
      %p46 = scmp.lt.s32.totalorder %s45, 0
      %s47 = scalar_select %p46, %s45, 0
      %s48 = smul.addr %s47, 8
      %s49 = scalar_lea.vmem %s3, %s48
      %s50 = sadd.s32 0, 0
    $region17: #{tpu_custom_call.1} parent=1 // pred_fallthru
      _
    // Predicated region
    $region18: #{tpu_custom_call.1} parent=1 // pred_check
      _
    $region19: #{tpu_custom_call.1} parent=1 // pred_check_branch
      %52 = sbr.rel (0) target = $region21
    $region20: #{tpu_custom_call.1} parent=1 // pred_region
      _
    $region21: #{tpu_custom_call.1} parent=1 // pred_fallthru
      _
    %s53 = sadd.s32 0, 0
    %p54 = scmp.lt.s32.totalorder %s53, 0
    %s55 = scalar_select %p54, %s53, 0
    %p56 = scmp.lt.s32.totalorder %s55, 0
    %s57 = scalar_select %p56, %s55, 0
    %s58 = smul.addr %s57, 8
    %s59 = scalar_lea.vmem %s0, %s58
    %s60 = sadd.s32 0, 0
    %p61 = scmp.lt.s32.totalorder %s60, 0
    %s62 = scalar_select %p61, %s60, 0
    %p63 = scmp.lt.s32.totalorder %s62, 0
    %s64 = scalar_select %p63, %s62, 0
    %s65 = smul.addr %s64, 8
    %s66 = scalar_lea.vmem %s1, %s65
    %s67 = sadd.s32 0, 0
    %p68 = scmp.lt.s32.totalorder %s67, 0
    %s69 = scalar_select %p68, %s67, 0
    %s70 = smul.addr %s69, 8
    %s71 = scalar_lea.vmem %s2, %s70
    %s72 = sadd.s32 0, 0
    %p73 = scmp.lt.s32.totalorder %s72, 0
    %s74 = scalar_select %p73, %s72, 0
    %s75 = smul.addr %s74, 8
    %s76 = scalar_lea.vmem %s3, %s75
    %s77 = sadd.s32 0, 0
    %p78 = scmp.lt.s32.totalorder %s77, 0
    %s79 = scalar_select %p78, %s77, 0
    %p80 = scmp.lt.s32.totalorder %s79, 0
    %s81 = scalar_select %p80, %s79, 0
    %s82 = smul.addr %s81, 8
    %s83 = scalar_lea.vmem %s0, %s82
    %s84 = sadd.s32 0, 0
    %p85 = scmp.lt.s32.totalorder %s84, 0
    %s86 = scalar_select %p85, %s84, 0
    %s87 = sadd.s32 0, 0
    %p88 = scmp.lt.s32.totalorder %s87, 0
    %s89 = scalar_select %p88, %s87, 0
    %p90 = scmp.lt.s32.totalorder %s89, 0
    %s91 = scalar_select %p90, %s89, 0
    %s92 = smul.addr %s91, 8
    %s93 = scalar_lea.vmem %s1, %s92
    %s94 = sadd.s32 0, 0
    %p95 = scmp.lt.s32.totalorder %s94, 0
    %s96 = scalar_select %p95, %s94, 0
    %s97 = sadd.s32 0, 0
    %p98 = scmp.lt.s32.totalorder %s97, 0
    %s99 = scalar_select %p98, %s97, 0
    %s100 = smul.addr %s99, 8
    %s101 = scalar_lea.vmem %s2, %s100
    %s102 = sadd.s32 0, 0
    %s103 = sadd.s32 0, 0
    %p104 = scmp.lt.s32.totalorder %s103, 0
    %s105 = scalar_select %p104, %s103, 0
    %s106 = smul.addr %s105, 8
    %s107 = scalar_lea.vmem %s3, %s106
    %s108 = sadd.s32 0, 0
    %p109 = scmp.eq.s32.totalorder 0, 0
    // Predicated region
    $region22: #{tpu_custom_call.1} parent=1 // pred_check
      %p110 = pneg %p109
    $region23: #{tpu_custom_call.1} parent=1 // pred_check_branch
      %112 = sbr.rel (%p110) target = $region25
    $region24: #{tpu_custom_call.1} parent=1 // pred_region
      %vm113 = vcmask 0
      %114 = vst.msk [vmem:[#allocation2] sm:$0x1] %vm113, 0.0
    $region25: #{tpu_custom_call.1} parent=1 // pred_fallthru
      _
    %v115 = vld [vmem:[%s83] sm:$0xff]
    %v116 = vld [vmem:[%s93] sm:$0xff]
    %v117 = vsub.f32 %v115, %v116
    %v118 = vadd.f32 %v117, 1e-06
    %v119 = vmul.f32 %v118, %v118
    %v120 = vld [vmem:[%s4] sm:$0xff]
    %v121 = vld [vmem:[%s4 + $0x8] sm:$0xff]
    %v122 = vld [vmem:[%s4 + $0x10] sm:$0xff]
    %v123 = vld [vmem:[%s4 + $0x18] sm:$0xff]
    %v124 = vld [vmem:[%s4 + $0x20] sm:$0xff]
    %v125 = vld [vmem:[%s4 + $0x28] sm:$0xff]
    %v126 = vld [vmem:[%s4 + $0x30] sm:$0xff]
    %v127 = vld [vmem:[%s4 + $0x38] sm:$0xff]
    %v128 = vld [vmem:[%s4 + $0x40] sm:$0xff]
    %v129 = vld [vmem:[%s4 + $0x48] sm:$0xff]
    %v130 = vld [vmem:[%s4 + $0x50] sm:$0xff]
    %v131 = vld [vmem:[%s4 + $0x58] sm:$0xff]
    %v132 = vld [vmem:[%s4 + $0x60] sm:$0xff]
    %v133 = vld [vmem:[%s4 + $0x68] sm:$0xff]
    %v134 = vld [vmem:[%s4 + $0x70] sm:$0xff]
    %v135 = vld [vmem:[%s4 + $0x78] sm:$0xff]
    %136 = vmatprep.subr.mxu0 0.0
    %v137 = vand.u32 %v120, 4294901760
    %138 = vmatpush1.msra.mxu0 %v137
    %139 = vmatprep.subr.mxu0 0.0
    %v140 = vand.u32 %v121, 4294901760
    %141 = vmatpush1.msra.mxu0 %v140
    %142 = vmatprep.subr.mxu0 0.0
    %v143 = vand.u32 %v122, 4294901760
    %144 = vmatpush1.msra.mxu0 %v143
    %145 = vmatprep.subr.mxu0 0.0
    %v146 = vand.u32 %v123, 4294901760
    %147 = vmatpush1.msra.mxu0 %v146
    %148 = vmatprep.subr.mxu0 0.0
    %v149 = vand.u32 %v124, 4294901760
    %150 = vmatpush1.msra.mxu0 %v149
    %151 = vmatprep.subr.mxu0 0.0
    %v152 = vand.u32 %v125, 4294901760
    %153 = vmatpush1.msra.mxu0 %v152
    %154 = vmatprep.subr.mxu0 0.0
    %v155 = vand.u32 %v126, 4294901760
    %156 = vmatpush1.msra.mxu0 %v155
    %157 = vmatprep.subr.mxu0 0.0
    %v158 = vand.u32 %v127, 4294901760
    %159 = vmatpush1.msra.mxu0 %v158
    %160 = vmatprep.subr.mxu0 0.0
    %v161 = vand.u32 %v128, 4294901760
    %162 = vmatpush1.msra.mxu0 %v161
    %163 = vmatprep.subr.mxu0 0.0
    %v164 = vand.u32 %v129, 4294901760
    %165 = vmatpush1.msra.mxu0 %v164
    %166 = vmatprep.subr.mxu0 0.0
    %v167 = vand.u32 %v130, 4294901760
    %168 = vmatpush1.msra.mxu0 %v167
    %169 = vmatprep.subr.mxu0 0.0
    %v170 = vand.u32 %v131, 4294901760
    %171 = vmatpush1.msra.mxu0 %v170
    %172 = vmatprep.subr.mxu0 0.0
    %v173 = vand.u32 %v132, 4294901760
    %174 = vmatpush1.msra.mxu0 %v173
    %175 = vmatprep.subr.mxu0 0.0
    %v176 = vand.u32 %v133, 4294901760
    %177 = vmatpush1.msra.mxu0 %v176
    %178 = vmatprep.subr.mxu0 0.0
    %v179 = vand.u32 %v134, 4294901760
    %180 = vmatpush1.msra.mxu0 %v179
    %181 = vmatprep.subr.mxu0 0.0
    %v182 = vand.u32 %v135, 4294901760
    %183 = vmatpush1.msra.mxu0 %v182
    %184 = vmatprep.subr.mxu0 0.0
    %185 = vmatpush1.msra.mxu0 0.0
    %186 = vmatprep.subr.mxu0 0.0
    %187 = vmatpush1.msra.mxu0 0.0
    %188 = vmatprep.subr.mxu0 0.0
    %189 = vmatpush1.msra.mxu0 0.0
    %190 = vmatprep.subr.mxu0 0.0
    %191 = vmatpush1.msra.mxu0 0.0
    %192 = vmatprep.subr.mxu0 0.0
    %193 = vmatpush1.msra.mxu0 0.0
    %194 = vmatprep.subr.mxu0 0.0
    %195 = vmatpush1.msra.mxu0 0.0
    %196 = vmatprep.subr.mxu0 0.0
    %197 = vmatpush1.msra.mxu0 0.0
    %198 = vmatprep.subr.mxu0 0.0
    %199 = vmatpush1.msra.mxu0 0.0
    %200 = vmatprep.subr.mxu0 0.0
    %201 = vmatpush1.msra.mxu0 0.0
    %202 = vmatprep.subr.mxu0 0.0
    %203 = vmatpush1.msra.mxu0 0.0
    %204 = vmatprep.subr.mxu0 0.0
    %205 = vmatpush1.msra.mxu0 0.0
    %206 = vmatprep.subr.mxu0 0.0
    %207 = vmatpush1.msra.mxu0 0.0
    %208 = vmatprep.subr.mxu0 0.0
    %209 = vmatpush1.msra.mxu0 0.0
    %210 = vmatprep.subr.mxu0 0.0
    %211 = vmatpush1.msra.mxu0 0.0
    %212 = vmatprep.subr.mxu0 0.0
    %213 = vmatpush1.msra.mxu0 0.0
    %214 = vmatprep.subr.mxu0 0.0
    %215 = vmatpush1.msra.mxu0 0.0
    %216 = vmatprep.mubr.f32.mxu0 0.0
    %v217 = vand.u32 %v119, 4294901760
    %v218 = vsub.f32 %v119, %v217
    %v219 = vand.u32 %v218, 4294901760
    %v220 = vsub.f32 %v218, %v219
    %v221 = vand.u32 %v220, 4294901760
    %222 = vmatmul.mubr.f32.gmra.mrb[0].mxu0 %v221
    %v223 = vpop.f32.mrb[0].mxu0
    %v224 = vadd.f32 0.0, %v223
    %v225 = vpop.f32.mrb[0].mxu0
    %226 = vdwg.mxu0
    %227 = vmatprep.subr.mxu0 0.0
    %v228 = vand.u32 %v120, 4294901760
    %v229 = vsub.f32 %v120, %v228
    %v230 = vand.u32 %v229, 4294901760
    %v231 = vsub.f32 %v229, %v230
    %v232 = vand.u32 %v231, 4294901760
    %233 = vmatpush1.msra.mxu0 %v232
    %234 = vmatprep.subr.mxu0 0.0
    %v235 = vand.u32 %v121, 4294901760
    %v236 = vsub.f32 %v121, %v235
    %v237 = vand.u32 %v236, 4294901760
    %v238 = vsub.f32 %v236, %v237
    %v239 = vand.u32 %v238, 4294901760
    %240 = vmatpush1.msra.mxu0 %v239
    %241 = vmatprep.subr.mxu0 0.0
    %v242 = vand.u32 %v122, 4294901760
    %v243 = vsub.f32 %v122, %v242
    %v244 = vand.u32 %v243, 4294901760
    %v245 = vsub.f32 %v243, %v244
    %v246 = vand.u32 %v245, 4294901760
    %247 = vmatpush1.msra.mxu0 %v246
    %248 = vmatprep.subr.mxu0 0.0
    %v249 = vand.u32 %v123, 4294901760
    %v250 = vsub.f32 %v123, %v249
    %v251 = vand.u32 %v250, 4294901760
    %v252 = vsub.f32 %v250, %v251
    %v253 = vand.u32 %v252, 4294901760
    %254 = vmatpush1.msra.mxu0 %v253
    %255 = vmatprep.subr.mxu0 0.0
    %v256 = vand.u32 %v124, 4294901760
    %v257 = vsub.f32 %v124, %v256
    %v258 = vand.u32 %v257, 4294901760
    %v259 = vsub.f32 %v257, %v258
    %v260 = vand.u32 %v259, 4294901760
    %261 = vmatpush1.msra.mxu0 %v260
    %262 = vmatprep.subr.mxu0 0.0
    %v263 = vand.u32 %v125, 4294901760
    %v264 = vsub.f32 %v125, %v263
    %v265 = vand.u32 %v264, 4294901760
    %v266 = vsub.f32 %v264, %v265
    %v267 = vand.u32 %v266, 4294901760
    %268 = vmatpush1.msra.mxu0 %v267
    %269 = vmatprep.subr.mxu0 0.0
    %v270 = vand.u32 %v126, 4294901760
    %v271 = vsub.f32 %v126, %v270
    %v272 = vand.u32 %v271, 4294901760
    %v273 = vsub.f32 %v271, %v272
    %v274 = vand.u32 %v273, 4294901760
    %275 = vmatpush1.msra.mxu0 %v274
    %276 = vmatprep.subr.mxu0 0.0
    %v277 = vand.u32 %v127, 4294901760
    %v278 = vsub.f32 %v127, %v277
    %v279 = vand.u32 %v278, 4294901760
    %v280 = vsub.f32 %v278, %v279
    %v281 = vand.u32 %v280, 4294901760
    %282 = vmatpush1.msra.mxu0 %v281
    %283 = vmatprep.subr.mxu0 0.0
    %v284 = vand.u32 %v128, 4294901760
    %v285 = vsub.f32 %v128, %v284
    %v286 = vand.u32 %v285, 4294901760
    %v287 = vsub.f32 %v285, %v286
    %v288 = vand.u32 %v287, 4294901760
    %289 = vmatpush1.msra.mxu0 %v288
    %290 = vmatprep.subr.mxu0 0.0
    %v291 = vand.u32 %v129, 4294901760
    %v292 = vsub.f32 %v129, %v291
    %v293 = vand.u32 %v292, 4294901760
    %v294 = vsub.f32 %v292, %v293
    %v295 = vand.u32 %v294, 4294901760
    %296 = vmatpush1.msra.mxu0 %v295
    %297 = vmatprep.subr.mxu0 0.0
    %v298 = vand.u32 %v130, 4294901760
    %v299 = vsub.f32 %v130, %v298
    %v300 = vand.u32 %v299, 4294901760
    %v301 = vsub.f32 %v299, %v300
    %v302 = vand.u32 %v301, 4294901760
    %303 = vmatpush1.msra.mxu0 %v302
    %304 = vmatprep.subr.mxu0 0.0
    %v305 = vand.u32 %v131, 4294901760
    %v306 = vsub.f32 %v131, %v305
    %v307 = vand.u32 %v306, 4294901760
    %v308 = vsub.f32 %v306, %v307
    %v309 = vand.u32 %v308, 4294901760
    %310 = vmatpush1.msra.mxu0 %v309
    %311 = vmatprep.subr.mxu0 0.0
    %v312 = vand.u32 %v132, 4294901760
    %v313 = vsub.f32 %v132, %v312
    %v314 = vand.u32 %v313, 4294901760
    %v315 = vsub.f32 %v313, %v314
    %v316 = vand.u32 %v315, 4294901760
    %317 = vmatpush1.msra.mxu0 %v316
    %318 = vmatprep.subr.mxu0 0.0
    %v319 = vand.u32 %v133, 4294901760
    %v320 = vsub.f32 %v133, %v319
    %v321 = vand.u32 %v320, 4294901760
    %v322 = vsub.f32 %v320, %v321
    %v323 = vand.u32 %v322, 4294901760
    %324 = vmatpush1.msra.mxu0 %v323
    %325 = vmatprep.subr.mxu0 0.0
    %v326 = vand.u32 %v134, 4294901760
    %v327 = vsub.f32 %v134, %v326
    %v328 = vand.u32 %v327, 4294901760
    %v329 = vsub.f32 %v327, %v328
    %v330 = vand.u32 %v329, 4294901760
    %331 = vmatpush1.msra.mxu0 %v330
    %332 = vmatprep.subr.mxu0 0.0
    %v333 = vand.u32 %v135, 4294901760
    %v334 = vsub.f32 %v135, %v333
    %v335 = vand.u32 %v334, 4294901760
    %v336 = vsub.f32 %v334, %v335
    %v337 = vand.u32 %v336, 4294901760
    %338 = vmatpush1.msra.mxu0 %v337
    %339 = vmatprep.subr.mxu0 0.0
    %340 = vmatpush1.msra.mxu0 0.0
    %341 = vmatprep.subr.mxu0 0.0
    %342 = vmatpush1.msra.mxu0 0.0
    %343 = vmatprep.subr.mxu0 0.0
    %344 = vmatpush1.msra.mxu0 0.0
    %345 = vmatprep.subr.mxu0 0.0
    %346 = vmatpush1.msra.mxu0 0.0
    %347 = vmatprep.subr.mxu0 0.0
    %348 = vmatpush1.msra.mxu0 0.0
    %349 = vmatprep.subr.mxu0 0.0
    %350 = vmatpush1.msra.mxu0 0.0
    %351 = vmatprep.subr.mxu0 0.0
    %352 = vmatpush1.msra.mxu0 0.0
    %353 = vmatprep.subr.mxu0 0.0
    %354 = vmatpush1.msra.mxu0 0.0
    %355 = vmatprep.subr.mxu0 0.0
    %356 = vmatpush1.msra.mxu0 0.0
    %357 = vmatprep.subr.mxu0 0.0
    %358 = vmatpush1.msra.mxu0 0.0
    %359 = vmatprep.subr.mxu0 0.0
    %360 = vmatpush1.msra.mxu0 0.0
    %361 = vmatprep.subr.mxu0 0.0
    %362 = vmatpush1.msra.mxu0 0.0
    %363 = vmatprep.subr.mxu0 0.0
    %364 = vmatpush1.msra.mxu0 0.0
    %365 = vmatprep.subr.mxu0 0.0
    %366 = vmatpush1.msra.mxu0 0.0
    %367 = vmatprep.subr.mxu0 0.0
    %368 = vmatpush1.msra.mxu0 0.0
    %369 = vmatprep.subr.mxu0 0.0
    %370 = vmatpush1.msra.mxu0 0.0
    %371 = vmatprep.mubr.f32.mxu0 0.0
    %v372 = vand.u32 %v119, 4294901760
    %373 = vmatmul.mubr.f32.gmra.mrb[0].mxu0 %v372
    %v374 = vpop.f32.mrb[0].mxu0
    %v375 = vadd.f32 %v224, %v374
    %v376 = vpop.f32.mrb[0].mxu0
    %377 = vdwg.mxu0
    %378 = vmatprep.subr.mxu0 0.0
    %v379 = vand.u32 %v120, 4294901760
    %v380 = vsub.f32 %v120, %v379
    %381 = vmatpush1.msra.mxu0 %v380
    %382 = vmatprep.subr.mxu0 0.0
    %v383 = vand.u32 %v121, 4294901760
    %v384 = vsub.f32 %v121, %v383
    %385 = vmatpush1.msra.mxu0 %v384
    %386 = vmatprep.subr.mxu0 0.0
    %v387 = vand.u32 %v122, 4294901760
    %v388 = vsub.f32 %v122, %v387
    %389 = vmatpush1.msra.mxu0 %v388
    %390 = vmatprep.subr.mxu0 0.0
    %v391 = vand.u32 %v123, 4294901760
    %v392 = vsub.f32 %v123, %v391
    %393 = vmatpush1.msra.mxu0 %v392
    %394 = vmatprep.subr.mxu0 0.0
    %v395 = vand.u32 %v124, 4294901760
    %v396 = vsub.f32 %v124, %v395
    %397 = vmatpush1.msra.mxu0 %v396
    %398 = vmatprep.subr.mxu0 0.0
    %v399 = vand.u32 %v125, 4294901760
    %v400 = vsub.f32 %v125, %v399
    %401 = vmatpush1.msra.mxu0 %v400
    %402 = vmatprep.subr.mxu0 0.0
    %v403 = vand.u32 %v126, 4294901760
    %v404 = vsub.f32 %v126, %v403
    %405 = vmatpush1.msra.mxu0 %v404
    %406 = vmatprep.subr.mxu0 0.0
    %v407 = vand.u32 %v127, 4294901760
    %v408 = vsub.f32 %v127, %v407
    %409 = vmatpush1.msra.mxu0 %v408
    %410 = vmatprep.subr.mxu0 0.0
    %v411 = vand.u32 %v128, 4294901760
    %v412 = vsub.f32 %v128, %v411
    %413 = vmatpush1.msra.mxu0 %v412
    %414 = vmatprep.subr.mxu0 0.0
    %v415 = vand.u32 %v129, 4294901760
    %v416 = vsub.f32 %v129, %v415
    %417 = vmatpush1.msra.mxu0 %v416
    %418 = vmatprep.subr.mxu0 0.0
    %v419 = vand.u32 %v130, 4294901760
    %v420 = vsub.f32 %v130, %v419
    %421 = vmatpush1.msra.mxu0 %v420
    %422 = vmatprep.subr.mxu0 0.0
    %v423 = vand.u32 %v131, 4294901760
    %v424 = vsub.f32 %v131, %v423
    %425 = vmatpush1.msra.mxu0 %v424
    %426 = vmatprep.subr.mxu0 0.0
    %v427 = vand.u32 %v132, 4294901760
    %v428 = vsub.f32 %v132, %v427
    %429 = vmatpush1.msra.mxu0 %v428
    %430 = vmatprep.subr.mxu0 0.0
    %v431 = vand.u32 %v133, 4294901760
    %v432 = vsub.f32 %v133, %v431
    %433 = vmatpush1.msra.mxu0 %v432
    %434 = vmatprep.subr.mxu0 0.0
    %v435 = vand.u32 %v134, 4294901760
    %v436 = vsub.f32 %v134, %v435
    %437 = vmatpush1.msra.mxu0 %v436
    %438 = vmatprep.subr.mxu0 0.0
    %v439 = vand.u32 %v135, 4294901760
    %v440 = vsub.f32 %v135, %v439
    %441 = vmatpush1.msra.mxu0 %v440
    %442 = vmatprep.subr.mxu0 0.0
    %443 = vmatpush1.msra.mxu0 0.0
    %444 = vmatprep.subr.mxu0 0.0
    %445 = vmatpush1.msra.mxu0 0.0
    %446 = vmatprep.subr.mxu0 0.0
    %447 = vmatpush1.msra.mxu0 0.0
    %448 = vmatprep.subr.mxu0 0.0
    %449 = vmatpush1.msra.mxu0 0.0
    %450 = vmatprep.subr.mxu0 0.0
    %451 = vmatpush1.msra.mxu0 0.0
    %452 = vmatprep.subr.mxu0 0.0
    %453 = vmatpush1.msra.mxu0 0.0
    %454 = vmatprep.subr.mxu0 0.0
    %455 = vmatpush1.msra.mxu0 0.0
    %456 = vmatprep.subr.mxu0 0.0
    %457 = vmatpush1.msra.mxu0 0.0
    %458 = vmatprep.subr.mxu0 0.0
    %459 = vmatpush1.msra.mxu0 0.0
    %460 = vmatprep.subr.mxu0 0.0
    %461 = vmatpush1.msra.mxu0 0.0
    %462 = vmatprep.subr.mxu0 0.0
    %463 = vmatpush1.msra.mxu0 0.0
    %464 = vmatprep.subr.mxu0 0.0
    %465 = vmatpush1.msra.mxu0 0.0
    %466 = vmatprep.subr.mxu0 0.0
    %467 = vmatpush1.msra.mxu0 0.0
    %468 = vmatprep.subr.mxu0 0.0
    %469 = vmatpush1.msra.mxu0 0.0
    %470 = vmatprep.subr.mxu0 0.0
    %471 = vmatpush1.msra.mxu0 0.0
    %472 = vmatprep.subr.mxu0 0.0
    %473 = vmatpush1.msra.mxu0 0.0
    %474 = vmatprep.mubr.f32.mxu0 0.0
    %v475 = vand.u32 %v119, 4294901760
    %v476 = vsub.f32 %v119, %v475
    %477 = vmatmul.mubr.f32.gmra.mrb[0].mxu0 %v476
    %v478 = vpop.f32.mrb[0].mxu0
    %v479 = vadd.f32 %v375, %v478
    %v480 = vpop.f32.mrb[0].mxu0
    %481 = vdwg.mxu0
    %482 = vmatprep.subr.mxu0 0.0
    %v483 = vand.u32 %v120, 4294901760
    %484 = vmatpush1.msra.mxu0 %v483
    %485 = vmatprep.subr.mxu0 0.0
    %v486 = vand.u32 %v121, 4294901760
    %487 = vmatpush1.msra.mxu0 %v486
    %488 = vmatprep.subr.mxu0 0.0
    %v489 = vand.u32 %v122, 4294901760
    %490 = vmatpush1.msra.mxu0 %v489
    %491 = vmatprep.subr.mxu0 0.0
    %v492 = vand.u32 %v123, 4294901760
    %493 = vmatpush1.msra.mxu0 %v492
    %494 = vmatprep.subr.mxu0 0.0
    %v495 = vand.u32 %v124, 4294901760
    %496 = vmatpush1.msra.mxu0 %v495
    %497 = vmatprep.subr.mxu0 0.0
    %v498 = vand.u32 %v125, 4294901760
    %499 = vmatpush1.msra.mxu0 %v498
    %500 = vmatprep.subr.mxu0 0.0
    %v501 = vand.u32 %v126, 4294901760
    %502 = vmatpush1.msra.mxu0 %v501
    %503 = vmatprep.subr.mxu0 0.0
    %v504 = vand.u32 %v127, 4294901760
    %505 = vmatpush1.msra.mxu0 %v504
    %506 = vmatprep.subr.mxu0 0.0
    %v507 = vand.u32 %v128, 4294901760
    %508 = vmatpush1.msra.mxu0 %v507
    %509 = vmatprep.subr.mxu0 0.0
    %v510 = vand.u32 %v129, 4294901760
    %511 = vmatpush1.msra.mxu0 %v510
    %512 = vmatprep.subr.mxu0 0.0
    %v513 = vand.u32 %v130, 4294901760
    %514 = vmatpush1.msra.mxu0 %v513
    %515 = vmatprep.subr.mxu0 0.0
    %v516 = vand.u32 %v131, 4294901760
    %517 = vmatpush1.msra.mxu0 %v516
    %518 = vmatprep.subr.mxu0 0.0
    %v519 = vand.u32 %v132, 4294901760
    %520 = vmatpush1.msra.mxu0 %v519
    %521 = vmatprep.subr.mxu0 0.0
    %v522 = vand.u32 %v133, 4294901760
    %523 = vmatpush1.msra.mxu0 %v522
    %524 = vmatprep.subr.mxu0 0.0
    %v525 = vand.u32 %v134, 4294901760
    %526 = vmatpush1.msra.mxu0 %v525
    %527 = vmatprep.subr.mxu0 0.0
    %v528 = vand.u32 %v135, 4294901760
    %529 = vmatpush1.msra.mxu0 %v528
    %530 = vmatprep.subr.mxu0 0.0
    %531 = vmatpush1.msra.mxu0 0.0
    %532 = vmatprep.subr.mxu0 0.0
    %533 = vmatpush1.msra.mxu0 0.0
    %534 = vmatprep.subr.mxu0 0.0
    %535 = vmatpush1.msra.mxu0 0.0
    %536 = vmatprep.subr.mxu0 0.0
    %537 = vmatpush1.msra.mxu0 0.0
    %538 = vmatprep.subr.mxu0 0.0
    %539 = vmatpush1.msra.mxu0 0.0
    %540 = vmatprep.subr.mxu0 0.0
    %541 = vmatpush1.msra.mxu0 0.0
    %542 = vmatprep.subr.mxu0 0.0
    %543 = vmatpush1.msra.mxu0 0.0
    %544 = vmatprep.subr.mxu0 0.0
    %545 = vmatpush1.msra.mxu0 0.0
    %546 = vmatprep.subr.mxu0 0.0
    %547 = vmatpush1.msra.mxu0 0.0
    %548 = vmatprep.subr.mxu0 0.0
    %549 = vmatpush1.msra.mxu0 0.0
    %550 = vmatprep.subr.mxu0 0.0
    %551 = vmatpush1.msra.mxu0 0.0
    %552 = vmatprep.subr.mxu0 0.0
    %553 = vmatpush1.msra.mxu0 0.0
    %554 = vmatprep.subr.mxu0 0.0
    %555 = vmatpush1.msra.mxu0 0.0
    %556 = vmatprep.subr.mxu0 0.0
    %557 = vmatpush1.msra.mxu0 0.0
    %558 = vmatprep.subr.mxu0 0.0
    %559 = vmatpush1.msra.mxu0 0.0
    %560 = vmatprep.subr.mxu0 0.0
    %561 = vmatpush1.msra.mxu0 0.0
    %562 = vmatprep.mubr.f32.mxu0 0.0
    %v563 = vand.u32 %v119, 4294901760
    %v564 = vsub.f32 %v119, %v563
    %v565 = vand.u32 %v564, 4294901760
    %566 = vmatmul.mubr.f32.gmra.mrb[0].mxu0 %v565
    %v567 = vpop.f32.mrb[0].mxu0
    %v568 = vadd.f32 %v479, %v567
    %v569 = vpop.f32.mrb[0].mxu0
    %570 = vdwg.mxu0
    %571 = vmatprep.subr.mxu0 0.0
    %v572 = vand.u32 %v120, 4294901760
    %v573 = vsub.f32 %v120, %v572
    %v574 = vand.u32 %v573, 4294901760
    %575 = vmatpush1.msra.mxu0 %v574
    %576 = vmatprep.subr.mxu0 0.0
    %v577 = vand.u32 %v121, 4294901760
    %v578 = vsub.f32 %v121, %v577
    %v579 = vand.u32 %v578, 4294901760
    %580 = vmatpush1.msra.mxu0 %v579
    %581 = vmatprep.subr.mxu0 0.0
    %v582 = vand.u32 %v122, 4294901760
    %v583 = vsub.f32 %v122, %v582
    %v584 = vand.u32 %v583, 4294901760
    %585 = vmatpush1.msra.mxu0 %v584
    %586 = vmatprep.subr.mxu0 0.0
    %v587 = vand.u32 %v123, 4294901760
    %v588 = vsub.f32 %v123, %v587
    %v589 = vand.u32 %v588, 4294901760
    %590 = vmatpush1.msra.mxu0 %v589
    %591 = vmatprep.subr.mxu0 0.0
    %v592 = vand.u32 %v124, 4294901760
    %v593 = vsub.f32 %v124, %v592
    %v594 = vand.u32 %v593, 4294901760
    %595 = vmatpush1.msra.mxu0 %v594
    %596 = vmatprep.subr.mxu0 0.0
    %v597 = vand.u32 %v125, 4294901760
    %v598 = vsub.f32 %v125, %v597
    %v599 = vand.u32 %v598, 4294901760
    %600 = vmatpush1.msra.mxu0 %v599
    %601 = vmatprep.subr.mxu0 0.0
    %v602 = vand.u32 %v126, 4294901760
    %v603 = vsub.f32 %v126, %v602
    %v604 = vand.u32 %v603, 4294901760
    %605 = vmatpush1.msra.mxu0 %v604
    %606 = vmatprep.subr.mxu0 0.0
    %v607 = vand.u32 %v127, 4294901760
    %v608 = vsub.f32 %v127, %v607
    %v609 = vand.u32 %v608, 4294901760
    %610 = vmatpush1.msra.mxu0 %v609
    %611 = vmatprep.subr.mxu0 0.0
    %v612 = vand.u32 %v128, 4294901760
    %v613 = vsub.f32 %v128, %v612
    %v614 = vand.u32 %v613, 4294901760
    %615 = vmatpush1.msra.mxu0 %v614
    %616 = vmatprep.subr.mxu0 0.0
    %v617 = vand.u32 %v129, 4294901760
    %v618 = vsub.f32 %v129, %v617
    %v619 = vand.u32 %v618, 4294901760
    %620 = vmatpush1.msra.mxu0 %v619
    %621 = vmatprep.subr.mxu0 0.0
    %v622 = vand.u32 %v130, 4294901760
    %v623 = vsub.f32 %v130, %v622
    %v624 = vand.u32 %v623, 4294901760
    %625 = vmatpush1.msra.mxu0 %v624
    %626 = vmatprep.subr.mxu0 0.0
    %v627 = vand.u32 %v131, 4294901760
    %v628 = vsub.f32 %v131, %v627
    %v629 = vand.u32 %v628, 4294901760
    %630 = vmatpush1.msra.mxu0 %v629
    %631 = vmatprep.subr.mxu0 0.0
    %v632 = vand.u32 %v132, 4294901760
    %v633 = vsub.f32 %v132, %v632
    %v634 = vand.u32 %v633, 4294901760
    %635 = vmatpush1.msra.mxu0 %v634
    %636 = vmatprep.subr.mxu0 0.0
    %v637 = vand.u32 %v133, 4294901760
    %v638 = vsub.f32 %v133, %v637
    %v639 = vand.u32 %v638, 4294901760
    %640 = vmatpush1.msra.mxu0 %v639
    %641 = vmatprep.subr.mxu0 0.0
    %v642 = vand.u32 %v134, 4294901760
    %v643 = vsub.f32 %v134, %v642
    %v644 = vand.u32 %v643, 4294901760
    %645 = vmatpush1.msra.mxu0 %v644
    %646 = vmatprep.subr.mxu0 0.0
    %v647 = vand.u32 %v135, 4294901760
    %v648 = vsub.f32 %v135, %v647
    %v649 = vand.u32 %v648, 4294901760
    %650 = vmatpush1.msra.mxu0 %v649
    %651 = vmatprep.subr.mxu0 0.0
    %652 = vmatpush1.msra.mxu0 0.0
    %653 = vmatprep.subr.mxu0 0.0
    %654 = vmatpush1.msra.mxu0 0.0
    %655 = vmatprep.subr.mxu0 0.0
    %656 = vmatpush1.msra.mxu0 0.0
    %657 = vmatprep.subr.mxu0 0.0
    %658 = vmatpush1.msra.mxu0 0.0
    %659 = vmatprep.subr.mxu0 0.0
    %660 = vmatpush1.msra.mxu0 0.0
    %661 = vmatprep.subr.mxu0 0.0
    %662 = vmatpush1.msra.mxu0 0.0
    %663 = vmatprep.subr.mxu0 0.0
    %664 = vmatpush1.msra.mxu0 0.0
    %665 = vmatprep.subr.mxu0 0.0
    %666 = vmatpush1.msra.mxu0 0.0
    %667 = vmatprep.subr.mxu0 0.0
    %668 = vmatpush1.msra.mxu0 0.0
    %669 = vmatprep.subr.mxu0 0.0
    %670 = vmatpush1.msra.mxu0 0.0
    %671 = vmatprep.subr.mxu0 0.0
    %672 = vmatpush1.msra.mxu0 0.0
    %673 = vmatprep.subr.mxu0 0.0
    %674 = vmatpush1.msra.mxu0 0.0
    %675 = vmatprep.subr.mxu0 0.0
    %676 = vmatpush1.msra.mxu0 0.0
    %677 = vmatprep.subr.mxu0 0.0
    %678 = vmatpush1.msra.mxu0 0.0
    %679 = vmatprep.subr.mxu0 0.0
    %680 = vmatpush1.msra.mxu0 0.0
    %681 = vmatprep.subr.mxu0 0.0
    %682 = vmatpush1.msra.mxu0 0.0
    %683 = vmatprep.mubr.f32.mxu0 0.0
    %v684 = vand.u32 %v119, 4294901760
    %685 = vmatmul.mubr.f32.gmra.mrb[0].mxu0 %v684
    %v686 = vpop.f32.mrb[0].mxu0
    %v687 = vadd.f32 %v568, %v686
    %v688 = vpop.f32.mrb[0].mxu0
    %689 = vdwg.mxu0
    %690 = vmatprep.subr.mxu0 0.0
    %v691 = vand.u32 %v120, 4294901760
    %692 = vmatpush1.msra.mxu0 %v691
    %693 = vmatprep.subr.mxu0 0.0
    %v694 = vand.u32 %v121, 4294901760
    %695 = vmatpush1.msra.mxu0 %v694
    %696 = vmatprep.subr.mxu0 0.0
    %v697 = vand.u32 %v122, 4294901760
    %698 = vmatpush1.msra.mxu0 %v697
    %699 = vmatprep.subr.mxu0 0.0
    %v700 = vand.u32 %v123, 4294901760
    %701 = vmatpush1.msra.mxu0 %v700
    %702 = vmatprep.subr.mxu0 0.0
    %v703 = vand.u32 %v124, 4294901760
    %704 = vmatpush1.msra.mxu0 %v703
    %705 = vmatprep.subr.mxu0 0.0
    %v706 = vand.u32 %v125, 4294901760
    %707 = vmatpush1.msra.mxu0 %v706
    %708 = vmatprep.subr.mxu0 0.0
    %v709 = vand.u32 %v126, 4294901760
    %710 = vmatpush1.msra.mxu0 %v709
    %711 = vmatprep.subr.mxu0 0.0
    %v712 = vand.u32 %v127, 4294901760
    %713 = vmatpush1.msra.mxu0 %v712
    %714 = vmatprep.subr.mxu0 0.0
    %v715 = vand.u32 %v128, 4294901760
    %716 = vmatpush1.msra.mxu0 %v715
    %717 = vmatprep.subr.mxu0 0.0
    %v718 = vand.u32 %v129, 4294901760
    %719 = vmatpush1.msra.mxu0 %v718
    %720 = vmatprep.subr.mxu0 0.0
    %v721 = vand.u32 %v130, 4294901760
    %722 = vmatpush1.msra.mxu0 %v721
    %723 = vmatprep.subr.mxu0 0.0
    %v724 = vand.u32 %v131, 4294901760
    %725 = vmatpush1.msra.mxu0 %v724
    %726 = vmatprep.subr.mxu0 0.0
    %v727 = vand.u32 %v132, 4294901760
    %728 = vmatpush1.msra.mxu0 %v727
    %729 = vmatprep.subr.mxu0 0.0
    %v730 = vand.u32 %v133, 4294901760
    %731 = vmatpush1.msra.mxu0 %v730
    %732 = vmatprep.subr.mxu0 0.0
    %v733 = vand.u32 %v134, 4294901760
    %734 = vmatpush1.msra.mxu0 %v733
    %735 = vmatprep.subr.mxu0 0.0
    %v736 = vand.u32 %v135, 4294901760
    %737 = vmatpush1.msra.mxu0 %v736
    %738 = vmatprep.subr.mxu0 0.0
    %739 = vmatpush1.msra.mxu0 0.0
    %740 = vmatprep.subr.mxu0 0.0
    %741 = vmatpush1.msra.mxu0 0.0
    %742 = vmatprep.subr.mxu0 0.0
    %743 = vmatpush1.msra.mxu0 0.0
    %744 = vmatprep.subr.mxu0 0.0
    %745 = vmatpush1.msra.mxu0 0.0
    %746 = vmatprep.subr.mxu0 0.0
    %747 = vmatpush1.msra.mxu0 0.0
    %748 = vmatprep.subr.mxu0 0.0
    %749 = vmatpush1.msra.mxu0 0.0
    %750 = vmatprep.subr.mxu0 0.0
    %751 = vmatpush1.msra.mxu0 0.0
    %752 = vmatprep.subr.mxu0 0.0
    %753 = vmatpush1.msra.mxu0 0.0
    %754 = vmatprep.subr.mxu0 0.0
    %755 = vmatpush1.msra.mxu0 0.0
    %756 = vmatprep.subr.mxu0 0.0
    %757 = vmatpush1.msra.mxu0 0.0
    %758 = vmatprep.subr.mxu0 0.0
    %759 = vmatpush1.msra.mxu0 0.0
    %760 = vmatprep.subr.mxu0 0.0
    %761 = vmatpush1.msra.mxu0 0.0
    %762 = vmatprep.subr.mxu0 0.0
    %763 = vmatpush1.msra.mxu0 0.0
    %764 = vmatprep.subr.mxu0 0.0
    %765 = vmatpush1.msra.mxu0 0.0
    %766 = vmatprep.subr.mxu0 0.0
    %767 = vmatpush1.msra.mxu0 0.0
    %768 = vmatprep.subr.mxu0 0.0
    %769 = vmatpush1.msra.mxu0 0.0
    %770 = vmatprep.mubr.f32.mxu0 0.0
    %v771 = vand.u32 %v119, 4294901760
    %772 = vmatmul.mubr.f32.gmra.mrb[0].mxu0 %v771
    %v773 = vpop.f32.mrb[0].mxu0
    %v774 = vadd.f32 %v687, %v773
    %v775 = vpop.f32.mrb[0].mxu0
    %776 = vdwg.mxu0
    %v777 = vrsqrt.pop %v774
    %v778 = vmul.f32 %v774, %v777
    %vm779 = vcmp.eq.f32.partialorder %v774, inf
    %v780 = vsel %vm779, %v774, %v778
    %vm781 = vcmp.eq.f32.partialorder %v774, 0.0
    %v782 = vand.u32 %v774, 2147483648
    %v783 = vsel %vm781, %v782, %v780
    %v784 = vsub.f32 1.0, %v783
    %v785 = vmax.f32 %v784, 0.0
    %v786 = vmul.f32 %v785, %v785
    %v787 = vld [vmem:[%s101] sm:$0xff]
    %v788 = vld [vmem:[%s107] sm:$0xff]
    %v789 = vmul.f32 %v787, %v774
    %v790 = vmul.f32 %v788, %v786
    %v791 = vadd.f32 %v789, %v790
    %vm792 = vcmask 31744
    %v793 = vsel %vm792, %v791, 0.0
    %794 = vadd.xlane.f32.xlu0 %v793
    %v795 = vpop.xlane.xlu0 %794
    %v796 = vld [vmem:[#allocation2] sm:$0x1]
    %v797 = vrot.slane %v795, 4
    %v798 = vadd.f32 %v795, %v797
    %v799 = vrot.slane %v798, 2
    %v800 = vadd.f32 %v798, %v799
    %v801 = vrot.slane %v800, 1
    %v802 = vadd.f32 %v800, %v801
    %v803 = vadd.f32 %v796, %v802
    %vm804 = vcmask 0
    %805 = vst.msk [vmem:[#allocation2] sm:$0x1] %vm804, %v803
    // Predicated region
    $region26: #{tpu_custom_call.1} parent=1 // pred_check
      %p806 = pneg %p109
    $region27: #{tpu_custom_call.1} parent=1 // pred_check_branch
      %808 = sbr.rel (%p806) target = $region29
    $region28: #{tpu_custom_call.1} parent=1 // pred_region
      %v809 = vld [vmem:[#allocation2] sm:$0x1]
      %v810 = vmul.f32 %v809, 0.125
      %811 = vst.msk [vmem:[#allocation3] sm:$0x1] %vm804, %v810
    $region29: #{tpu_custom_call.1} parent=1 // pred_fallthru
      _
    // Predicated region
    $region30: #{tpu_custom_call.1} parent=1 // pred_check
      _
    $region31: #{tpu_custom_call.1} parent=1 // pred_check_branch
      %813 = sbr.rel (0) target = $region33
    $region32: #{tpu_custom_call.1} parent=1 // pred_region
      %s815 = ssub.s32 16, 16
      %816 = vsyncadd [#allocation4], %s815
      %s818 = sshll.u32 [#allocation3], 4
      %s819 = int_to_ptr.vmem [resolvable:$true] %s818
      %821 = dma.vmem_to_hbm [thread:$0]  %s819, 16, %s5, [#allocation4]
    $region33: #{tpu_custom_call.1} parent=1 // pred_fallthru
      _
    // Predicated region
    $region34: #{tpu_custom_call.1} parent=1 // pred_check
      _
    $region35: #{tpu_custom_call.1} parent=1 // pred_check_branch
      %823 = sbr.rel (0) target = $region37
    $region36: #{tpu_custom_call.1} parent=1 // pred_region
      %824 = dma.done [#allocation4], 16
    $region37: #{tpu_custom_call.1} parent=1 // pred_fallthru
      _
    %825 = vsyncpa [#allocation4], 1

</llo_original>
